<compile_context>
chip_gen: v6e
topology: v6e:2x2x1
jax: 0.10.0
libtpu: 0.0.40
codegen_flags: <defaults>
</compile_context>

<pallas_src>
import jax
import jax.numpy as jnp
from jax.experimental import pallas as pl
from jax.experimental.pallas import tpu as pltpu

_HPAD = 128  # hidden dim zero-padded to a full lane width


def _mlp_kernel(x_ref, w1_ref, b1_ref, w2_ref, b2_ref, o_ref):
    # x tile arrives as f32; cast to bf16 on the VPU (free slot) feeding the MXU.
    x_bf = x_ref[...].astype(jnp.bfloat16)
    h = jnp.dot(x_bf, w1_ref[...], preferred_element_type=jnp.float32)  # (TB, 128) f32
    h = jnp.maximum(h + b1_ref[...], 0.0)                    # bias + ReLU (f32, VPU)
    # 128 -> 1 projection off the MXU: VPU multiply + lane reduction (XLU).
    # Padded hidden columns are exactly zero in both h and w2, so they add 0.
    y = jnp.sum(h * w2_ref[...], axis=-1, keepdims=True)     # (TB, 1) f32
    y = y + b2_ref[0, 0]                                      # scalar bias from SMEM
    o_ref[...] = jax.nn.sigmoid(y).astype(o_ref.dtype)


def simple_nn_forward(x, w1_t, b1, w2_row, b2, *, block_batch=None):
    """x: (B, D1, D2) float32.  w1_t: (K, 64) f32, b1: (1, 64) f32,
    w2_row: (1, 64) f32, b2: (1, 1) f32.  Returns (B, 1) float32."""
    B = x.shape[0]
    x2d = x.reshape(B, -1)                 # == nn.Flatten(), free row-major relabel
    K = x2d.shape[1]
    H = w1_t.shape[1]                      # 64

    # Zero-pad the hidden dim to a full lane width; resident weights stay tiny.
    w1_p = jnp.zeros((K, _HPAD), jnp.float32).at[:, :H].set(w1_t).astype(jnp.bfloat16)
    b1_p = jnp.zeros((1, _HPAD), jnp.float32).at[:, :H].set(b1)
    w2_p = jnp.zeros((1, _HPAD), jnp.float32).at[:, :H].set(w2_row)

    # --- batch tile selection --------------------------------------------
    # Budget the two f32 x buffers at ~8 MiB so the total double-buffered
    # footprint stays well inside v7x's scoped VMEM (and everyone else's).
    x_budget = 8 * 1024 * 1024
    tb_cap = max(8, (x_budget // (2 * K * 4) // 8) * 8)      # 8192 at K=128
    if block_batch is None:
        block_batch = tb_cap
    TB = min(block_batch, B)
    if B > 1024:
        # Guarantee >= 2 grid tiles so the "parallel" axis can use both v7x TCs.
        TB = min(TB, pl.cdiv(B, 2))
    if TB != B:
        TB = max(8, (TB // 8) * 8)         # sublane-aligned tile
    nb = pl.cdiv(B, TB)

    # Scoped-VMEM limit from the actual footprint (x f32 double-buffer,
    # lane-padded output double-buffer, resident weights) plus margin.
    vmem_bytes = (2 * TB * K * 4          # x, f32, double-buffered
                  + 2 * TB * 128 * 4      # (TB,1) out tiles, lane-padded
                  + K * _HPAD * 2         # W1 (bf16), resident
                  + 3 * _HPAD * 4)        # b1, w2 rows
    vmem_limit = int(max(16 * 1024 * 1024, vmem_bytes + 2 * 1024 * 1024))

    cost = pl.CostEstimate(
        flops=2 * B * K * _HPAD + 3 * B * _HPAD,
        transcendentals=B,                                    # sigmoid
        bytes_accessed=B * K * 4 + K * _HPAD * 2 + (2 * _HPAD + 1) * 4 + B * 4,
    )

    return pl.pallas_call(
        _mlp_kernel,
        out_shape=jax.ShapeDtypeStruct((B, 1), jnp.float32),
        grid_spec=pltpu.PrefetchScalarGridSpec(
            num_scalar_prefetch=0,
            grid=(nb,),
            in_specs=[
                pl.BlockSpec((TB, K), lambda i: (i, 0)),        # x tile (f32, streamed)
                pl.BlockSpec((K, _HPAD), lambda i: (0, 0)),     # W1^T (bf16), resident
                pl.BlockSpec((1, _HPAD), lambda i: (0, 0)),     # b1 (f32)
                pl.BlockSpec((1, _HPAD), lambda i: (0, 0)),     # w2 row (f32)
                pl.BlockSpec(memory_space=pltpu.MemorySpace.SMEM),  # b2 scalar
            ],
            out_specs=pl.BlockSpec((TB, 1), lambda i: (i, 0)),
        ),
        compiler_params=pltpu.CompilerParams(
            dimension_semantics=("parallel",),                # megacore-shardable
            vmem_limit_bytes=vmem_limit,
        ),
        cost_estimate=cost,
    )(x2d, w1_p, b1_p, w2_p, b2)


def init_params(key, input_size, hidden=64, out=1):
    """PyTorch-style Linear init: U(-1/sqrt(fan_in), 1/sqrt(fan_in))."""
    k1, k2, k3, k4 = jax.random.split(key, 4)
    bound1 = 1.0 / jnp.sqrt(input_size)
    bound2 = 1.0 / jnp.sqrt(hidden)
    w1_t = jax.random.uniform(k1, (input_size, hidden), jnp.float32, -bound1, bound1)
    b1 = jax.random.uniform(k2, (1, hidden), jnp.float32, -bound1, bound1)
    # fc2 weight stored as a (1, 64) row (used via VPU multiply + reduce).
    w2_row = jax.random.uniform(k3, (out, hidden), jnp.float32, -bound2, bound2)
    b2 = jax.random.uniform(k4, (1, out), jnp.float32, -bound2, bound2)
    return w1_t, b1, w2_row, b2


def reference_forward(x, w1_t, b1, w2_row, b2):
    """Pure-JAX reference applying the same in-kernel bf16 rounding of x and W1."""
    B = x.shape[0]
    x2d = x.reshape(B, -1).astype(jnp.bfloat16).astype(jnp.float32)
    w1 = w1_t.astype(jnp.bfloat16).astype(jnp.float32)
    h = jnp.maximum(
        jax.lax.dot(x2d, w1, precision=jax.lax.Precision.HIGHEST) + b1, 0.0
    )
    y = jnp.sum(h * w2_row, axis=-1, keepdims=True) + b2[0, 0]
    return jax.nn.sigmoid(y)


if __name__ == "__main__":
    key = jax.random.PRNGKey(0)
    kx, kp = jax.random.split(key)

    # Small shapes consistent with the module: X_train is (N, seq, features).
    B, D1, D2 = 16, 8, 16          # input_size = 128
    input_size = D1 * D2

    x = jax.random.normal(kx, (B, D1, D2), dtype=jnp.float32)
    w1_t, b1, w2_row, b2 = init_params(kp, input_size)

    # block_batch=8 forces a 2-tile grid so the batch-tiled path is exercised.
    out = simple_nn_forward(x, w1_t, b1, w2_row, b2, block_batch=8)
    out = jax.block_until_ready(out)

    ref = reference_forward(x, w1_t, b1, w2_row, b2)
    assert out.shape == (B, 1), out.shape
    assert jnp.allclose(out, ref, atol=2e-4, rtol=2e-4), "mismatch vs reference"

    # Also exercise the default (single-tile at this small B) tile selection.
    out2 = jax.block_until_ready(simple_nn_forward(x, w1_t, b1, w2_row, b2))
    assert jnp.allclose(out2, ref, atol=2e-4, rtol=2e-4), "mismatch (default tile)"

    print("KERNEL_OK")
</pallas_src>

<mosaic_0001>
module attributes {stable_mosaic.version = 11 : i64} {
  func.func @_mlp_kernel(%arg0: i32, %arg1: memref<8x128xf32, #tpu.memory_space<vmem>>, %arg2: memref<128x128xbf16, #tpu.memory_space<vmem>>, %arg3: memref<1x128xf32, #tpu.memory_space<vmem>>, %arg4: memref<1x128xf32, #tpu.memory_space<vmem>>, %arg5: memref<1x1xf32, #tpu.memory_space<smem>>, %arg6: memref<8x1xf32, #tpu.memory_space<vmem>>) attributes {dimension_semantics = [#tpu.dimension_semantics<parallel>], iteration_bounds = array<i64: 2>, scalar_prefetch = 0 : i64, scratch_operands = 0 : i64, tpu.core_type = #tpu.core_type<tc>, window_params = [{transform_indices = @transform_0, window_bounds = array<i64: 8, 128>}, {pipeline_mode = #tpu.pipeline_mode<synchronous>, transform_indices = @transform_1, window_bounds = array<i64: 128, 128>}, {pipeline_mode = #tpu.pipeline_mode<synchronous>, transform_indices = @transform_2, window_bounds = array<i64: 1, 128>}, {pipeline_mode = #tpu.pipeline_mode<synchronous>, transform_indices = @transform_3, window_bounds = array<i64: 1, 128>}, {transform_indices = @transform_4, window_bounds = array<i64: 1, 1>}, {transform_indices = @transform_5, window_bounds = array<i64: 8, 1>}]} {
    %c0 = arith.constant 0 : index
    %c0_0 = arith.constant 0 : index
    %0 = vector.load %arg1[%c0, %c0_0] : memref<8x128xf32, #tpu.memory_space<vmem>>, vector<8x128xf32>
    %1 = arith.truncf %0 : vector<8x128xf32> to vector<8x128xbf16>
    %c0_1 = arith.constant 0 : index
    %c0_2 = arith.constant 0 : index
    %2 = vector.load %arg2[%c0_1, %c0_2] : memref<128x128xbf16, #tpu.memory_space<vmem>>, vector<128x128xbf16>
    %cst = arith.constant dense<0.000000e+00> : vector<8x128xf32>
    %3 = tpu.matmul %1, %2, %cst {dimension_numbers = #tpu.dot_dimension_numbers<[1], [0], [0], [1], [0, 0, 1, 1], [], []>} : vector<8x128xbf16>, vector<128x128xbf16>, vector<8x128xf32> -> vector<8x128xf32>
    %c0_3 = arith.constant 0 : index
    %c0_4 = arith.constant 0 : index
    %4 = vector.load %arg3[%c0_3, %c0_4] : memref<1x128xf32, #tpu.memory_space<vmem>>, vector<1x128xf32>
    %5 = vector.broadcast %4 : vector<1x128xf32> to vector<8x128xf32>
    %6 = arith.addf %3, %5 : vector<8x128xf32>
    %cst_5 = arith.constant 0.000000e+00 : f32
    %7 = vector.broadcast %cst_5 : f32 to vector<8x128xf32>
    %8 = arith.maximumf %6, %7 : vector<8x128xf32>
    %c0_6 = arith.constant 0 : index
    %c0_7 = arith.constant 0 : index
    %9 = vector.load %arg4[%c0_6, %c0_7] : memref<1x128xf32, #tpu.memory_space<vmem>>, vector<1x128xf32>
    %10 = vector.broadcast %9 : vector<1x128xf32> to vector<8x128xf32>
    %11 = arith.mulf %8, %10 : vector<8x128xf32>
    %cst_8 = arith.constant dense<0.000000e+00> : vector<8xf32>
    %12 = vector.multi_reduction <add>, %11, %cst_8 [1] : vector<8x128xf32> to vector<8xf32>
    %13 = vector.shape_cast %12 : vector<8xf32> to vector<8x1xf32>
    %c0_9 = arith.constant 0 : index
    %c0_10 = arith.constant 0 : index
    %14 = memref.load %arg5[%c0_9, %c0_10] : memref<1x1xf32, #tpu.memory_space<smem>>
    %15 = vector.broadcast %14 : f32 to vector<8x1xf32>
    %16 = arith.addf %13, %15 : vector<8x1xf32>
    %17 = arith.negf %16 : vector<8x1xf32>
    %18 = math.exp %17 : vector<8x1xf32>
    %cst_11 = arith.constant 1.000000e+00 : f32
    %19 = vector.broadcast %cst_11 : f32 to vector<8x1xf32>
    %20 = arith.addf %19, %18 : vector<8x1xf32>
    %21 = arith.divf %19, %20 : vector<8x1xf32>
    %c0_12 = arith.constant 0 : index
    %c0_13 = arith.constant 0 : index
    %22 = vector.load %arg6[%c0_12, %c0_13] : memref<8x1xf32, #tpu.memory_space<vmem>>, vector<8x1xf32>
    tpu.vector_store %arg6[%c0_12, %c0_13], %21 {strides = array<i32>} : memref<8x1xf32, #tpu.memory_space<vmem>>, vector<8x1xf32>,
    return
  }
  func.func @transform_0(%arg0: i32) -> (i32, i32) {
    %c0_i32 = arith.constant 0 : i32
    %c0_i32_0 = arith.constant 0 : i32
    return %arg0, %c0_i32 : i32, i32
  }
  func.func @transform_1(%arg0: i32) -> (i32, i32) {
    %c0_i32 = arith.constant 0 : i32
    %c0_i32_0 = arith.constant 0 : i32
    %c0_i32_1 = arith.constant 0 : i32
    return %c0_i32, %c0_i32_0 : i32, i32
  }
  func.func @transform_2(%arg0: i32) -> (i32, i32) {
    %c0_i32 = arith.constant 0 : i32
    %c0_i32_0 = arith.constant 0 : i32
    %c0_i32_1 = arith.constant 0 : i32
    return %c0_i32, %c0_i32_0 : i32, i32
  }
  func.func @transform_3(%arg0: i32) -> (i32, i32) {
    %c0_i32 = arith.constant 0 : i32
    %c0_i32_0 = arith.constant 0 : i32
    %c0_i32_1 = arith.constant 0 : i32
    return %c0_i32, %c0_i32_0 : i32, i32
  }
  func.func @transform_4(%arg0: i32) -> (i32, i32) {
    %c0_i32 = arith.constant 0 : i32
    %c0_i32_0 = arith.constant 0 : i32
    %c0_i32_1 = arith.constant 0 : i32
    return %c0_i32, %c0_i32_0 : i32, i32
  }
  func.func @transform_5(%arg0: i32) -> (i32, i32) {
    %c0_i32 = arith.constant 0 : i32
    %c0_i32_0 = arith.constant 0 : i32
    return %arg0, %c0_i32 : i32, i32
  }
}

</mosaic_0001>

<llo_original>
// kernel: tpu_custom_call.1
$region0: #{tpu_custom_call.1}
  #allocation0 [shape = 'u32[]', space=smem, size = 0x4, offset = 0x4, fixed_abs, tag = 'smem constant byte address 0x4 - core index']
  #allocation1 [shape = 'u32[144,128]{1,0:T(1,128)}', space=vmem, size = 0x12000, scoped, tag = 'internal scratch']
  #allocation2 [shape = 'f32[1,1]{1,0:T(1,128)S(6)}', space=smem, size = 0x200, scoped, tag = 'scoped memory for tpu_custom_call.1']
  %s0 = inlined_call_operand.hbm [shape: f32[16,128], index: 0, kind: input, shape index: {}]
  %s1 = inlined_call_operand.hbm [shape: bf16[128,128], index: 1, kind: input, shape index: {}]
  %s2 = inlined_call_operand.vmem [shape: f32[1,128], index: 2, kind: input, shape index: {}]
  %s3 = inlined_call_operand.vmem [shape: f32[1,128], index: 3, kind: input, shape index: {}]
  %s4 = inlined_call_operand.<no memory space> [shape: f32[1,1], index: 4, kind: input, shape index: {}]
  %s5 = inlined_call_operand.vmem [shape: f32[16,1], index: 5, kind: output, shape index: {}]
  %s6 = sld [smem:[#allocation0]]
  $region61: #{tpu_custom_call.1} parent=0
    _
  %s8 = ssub.s32 1, %s6
  %s9 = scalar_select 0, %s8, %s6
  %10 = sst [smem:[#allocation2]] %s4
  $region1: #{tpu_custom_call.1} parent=0
    #allocation3 [shape = 'u8[8192]{0}', space=vmem, size = 0x2000, scoped, tag = 'input window, operand 0']
    #allocation4 [shape = 's32[2]{0}', space=sflag, size = 0x8, scoped, tag = 'scoped memory for tpu_custom_call.1']
    #allocation5 [shape = 'u8[32768]{0}', space=vmem, size = 0x8000, scoped, tag = 'input window, operand 1, single buffered']
    #allocation6 [shape = 's32[1]{0}', space=sflag, size = 0x4, scoped, tag = 'scoped memory for tpu_custom_call.1']
    %11 = vsyncpa [#allocation4], 0
    %s12 = scalar_lea.sflag [#allocation4], 1
    %13 = vsyncpa %s12, 0
    %14 = vsyncpa [#allocation6], 0
    loop: start=0, step=1, limit=4
    $region2: #{tpu_custom_call.1} parent=1 // loop_pre_header
      _
    $region3: #{tpu_custom_call.1} parent=1 // loop_header
      %s16 = sphi 0, %s20
      %p17 = scmp.ge.s32.totalorder %s16, 4
      %s26 = sphi 0, %s28
      %s29 = sphi 0, %s26
      %s30 = sphi 0, %s29
      %s46 = sphi 0, %s30
      %s50 = sphi 0, %s50
      %s52 = sphi 0, %s50
      %s53 = sphi 0, %s52
      %s67 = sphi 0, %s53
      %s71 = sphi 0, %s71
      %s73 = sphi 0, %s71
      %s74 = sphi 0, %s73
      %s88 = sphi 0, %s74
      %s92 = sphi 0, %s92
      %s94 = sphi 0, %s92
      %s95 = sphi 0, %s94
      %s109 = sphi 0, %s95
      %s113 = sphi 0, %s113
      %s115 = sphi 0, %s113
      %s116 = sphi 0, %s115
      %s130 = sphi 0, %s116
      %s136 = sphi 0, %s138
      %s139 = sphi 0, %s136
      %s140 = sphi 0, %s139
      %s156 = sphi 0, %s140
    $region4: #{tpu_custom_call.1} parent=1 // loop_header_branch
      %19 = sbr.rel (%p17) target = $region8
    $region5: #{tpu_custom_call.1} parent=1 // loop_body
      %s21 = ssub.s32 %s16, 1
      %s22 = ssub.s32 %s16, 2
      %s23 = sadd.s32 %s16, 1
      %s24 = ssub.s32 %s16, %s23
      %p25 = scmp.eq.s32.totalorder %s24, 0
      %s27 = sadd.s32 %s26, 1
      %s28 = scalar_select %p25, %s26, %s27
      %p31 = pneg %p25
      %p32 = scmp.eq.s32.totalorder %s16, 1
      %p33 = por %p31, %p32
      %p34 = scmp.ne.s32.totalorder %s26, %s29
      %p35 = scmp.eq.s32.totalorder %s16, 0
      %p36 = por %p34, %p35
      %p37 = scmp.ne.s32.totalorder %s26, %s29
      %p38 = scmp.eq.s32.totalorder %s21, 1
      %p39 = por %p37, %p38
      %p40 = scmp.ne.s32.totalorder %s29, %s30
      %p41 = scmp.eq.s32.totalorder %s21, 0
      %p42 = por %p40, %p41
      %p43 = scmp.ne.s32.totalorder %s29, %s30
      %p44 = scmp.eq.s32.totalorder %s22, 1
      %p45 = por %p43, %p44
      %p47 = scmp.ne.s32.totalorder %s30, %s46
      %p48 = scmp.eq.s32.totalorder %s22, 0
      %p49 = por %p47, %p48
      %s51 = sadd.s32 %s50, 1
      %p54 = scmp.eq.s32.totalorder %s16, 1
      %p55 = scmp.ne.s32.totalorder %s50, %s52
      %p56 = scmp.eq.s32.totalorder %s16, 0
      %p57 = por %p55, %p56
      %p58 = scmp.ne.s32.totalorder %s50, %s52
      %p59 = scmp.eq.s32.totalorder %s21, 1
      %p60 = por %p58, %p59
      %p61 = scmp.ne.s32.totalorder %s52, %s53
      %p62 = scmp.eq.s32.totalorder %s21, 0
      %p63 = por %p61, %p62
      %p64 = scmp.ne.s32.totalorder %s52, %s53
      %p65 = scmp.eq.s32.totalorder %s22, 1
      %p66 = por %p64, %p65
      %p68 = scmp.ne.s32.totalorder %s53, %s67
      %p69 = scmp.eq.s32.totalorder %s22, 0
      %p70 = por %p68, %p69
      %s72 = sadd.s32 %s71, 1
      %p75 = scmp.eq.s32.totalorder %s16, 1
      %p76 = scmp.ne.s32.totalorder %s71, %s73
      %p77 = scmp.eq.s32.totalorder %s16, 0
      %p78 = por %p76, %p77
      %p79 = scmp.ne.s32.totalorder %s71, %s73
      %p80 = scmp.eq.s32.totalorder %s21, 1
      %p81 = por %p79, %p80
      %p82 = scmp.ne.s32.totalorder %s73, %s74
      %p83 = scmp.eq.s32.totalorder %s21, 0
      %p84 = por %p82, %p83
      %p85 = scmp.ne.s32.totalorder %s73, %s74
      %p86 = scmp.eq.s32.totalorder %s22, 1
      %p87 = por %p85, %p86
      %p89 = scmp.ne.s32.totalorder %s74, %s88
      %p90 = scmp.eq.s32.totalorder %s22, 0
      %p91 = por %p89, %p90
      %s93 = sadd.s32 %s92, 1
      %p96 = scmp.eq.s32.totalorder %s16, 1
      %p97 = scmp.ne.s32.totalorder %s92, %s94
      %p98 = scmp.eq.s32.totalorder %s16, 0
      %p99 = por %p97, %p98
      %p100 = scmp.ne.s32.totalorder %s92, %s94
      %p101 = scmp.eq.s32.totalorder %s21, 1
      %p102 = por %p100, %p101
      %p103 = scmp.ne.s32.totalorder %s94, %s95
      %p104 = scmp.eq.s32.totalorder %s21, 0
      %p105 = por %p103, %p104
      %p106 = scmp.ne.s32.totalorder %s94, %s95
      %p107 = scmp.eq.s32.totalorder %s22, 1
      %p108 = por %p106, %p107
      %p110 = scmp.ne.s32.totalorder %s95, %s109
      %p111 = scmp.eq.s32.totalorder %s22, 0
      %p112 = por %p110, %p111
      %s114 = sadd.s32 %s113, 1
      %p117 = scmp.eq.s32.totalorder %s16, 1
      %p118 = scmp.ne.s32.totalorder %s113, %s115
      %p119 = scmp.eq.s32.totalorder %s16, 0
      %p120 = por %p118, %p119
      %p121 = scmp.ne.s32.totalorder %s113, %s115
      %p122 = scmp.eq.s32.totalorder %s21, 1
      %p123 = por %p121, %p122
      %p124 = scmp.ne.s32.totalorder %s115, %s116
      %p125 = scmp.eq.s32.totalorder %s21, 0
      %p126 = por %p124, %p125
      %p127 = scmp.ne.s32.totalorder %s115, %s116
      %p128 = scmp.eq.s32.totalorder %s22, 1
      %p129 = por %p127, %p128
      %p131 = scmp.ne.s32.totalorder %s116, %s130
      %p132 = scmp.eq.s32.totalorder %s22, 0
      %p133 = por %p131, %p132
      %s134 = ssub.s32 %s16, %s23
      %p135 = scmp.eq.s32.totalorder %s134, 0
      %s137 = sadd.s32 %s136, 1
      %s138 = scalar_select %p135, %s136, %s137
      %p141 = pneg %p135
      %p142 = scmp.eq.s32.totalorder %s16, 1
      %p143 = por %p141, %p142
      %p144 = scmp.ne.s32.totalorder %s136, %s139
      %p145 = scmp.eq.s32.totalorder %s16, 0
      %p146 = por %p144, %p145
      %p147 = scmp.ne.s32.totalorder %s136, %s139
      %p148 = scmp.eq.s32.totalorder %s21, 1
      %p149 = por %p147, %p148
      %p150 = scmp.ne.s32.totalorder %s139, %s140
      %p151 = scmp.eq.s32.totalorder %s21, 0
      %p152 = por %p150, %p151
      %p153 = scmp.ne.s32.totalorder %s139, %s140
      %p154 = scmp.eq.s32.totalorder %s22, 1
      %p155 = por %p153, %p154
      %p157 = scmp.ne.s32.totalorder %s140, %s156
      %p158 = scmp.eq.s32.totalorder %s22, 0
      %p159 = por %p157, %p158
      %p160 = scmp.le.s32.totalorder 1, %s16
      %p161 = scmp.lt.s32.totalorder %s16, 3
      %p162 = pnand %p160, %p161
      %p163 = pneg %p162
      // Predicated region
      $region9: #{tpu_custom_call.1} parent=5 // pred_check
        _
      $region10: #{tpu_custom_call.1} parent=5 // pred_check_branch
        %165 = sbr.rel (%p162) target = $region12
      $region11: #{tpu_custom_call.1} parent=5 // pred_region
        %s166 = ssub.s32 %s16, 1
        // Predicated region
        $region13: #{tpu_custom_call.1} parent=11 // pred_check
          %p167 = pneg %p63
        $region14: #{tpu_custom_call.1} parent=11 // pred_check_branch
          %169 = sbr.rel (%p167) target = $region16
        $region15: #{tpu_custom_call.1} parent=11 // pred_region
          %s171 = ssub.s32 1024, 1024
          %172 = vsyncadd [#allocation6], %s171
          %s173 = sshll.u32 [#allocation5], 4
          %s174 = int_to_ptr.vmem [resolvable:$true] %s173
          %179 = dma.hbm_to_vmem [thread:$0]  %s1, 1024, %s174, [#allocation6], 64, 64, 4
        $region16: #{tpu_custom_call.1} parent=11 // pred_fallthru
          _
        // Predicated region
        $region17: #{tpu_custom_call.1} parent=11 // pred_check
          %p180 = pneg %p84
        $region18: #{tpu_custom_call.1} parent=11 // pred_check_branch
          %182 = sbr.rel (%p180) target = $region20
        $region19: #{tpu_custom_call.1} parent=11 // pred_region
          _
        $region20: #{tpu_custom_call.1} parent=11 // pred_fallthru
          _
        // Predicated region
        $region21: #{tpu_custom_call.1} parent=11 // pred_check
          %p183 = pneg %p105
        $region22: #{tpu_custom_call.1} parent=11 // pred_check_branch
          %185 = sbr.rel (%p183) target = $region24
        $region23: #{tpu_custom_call.1} parent=11 // pred_region
          _
        $region24: #{tpu_custom_call.1} parent=11 // pred_fallthru
          _
        // Predicated region
        $region25: #{tpu_custom_call.1} parent=11 // pred_check
          %p186 = pneg %p126
        $region26: #{tpu_custom_call.1} parent=11 // pred_check_branch
          %188 = sbr.rel (%p186) target = $region28
        $region27: #{tpu_custom_call.1} parent=11 // pred_region
          _
        $region28: #{tpu_custom_call.1} parent=11 // pred_fallthru
          _
      $region12: #{tpu_custom_call.1} parent=5 // pred_fallthru
        _
      %p189 = scmp.lt.s32.totalorder %s16, 2
      // Predicated region
      $region29: #{tpu_custom_call.1} parent=5 // pred_check
        %p190 = pneg %p189
      $region30: #{tpu_custom_call.1} parent=5 // pred_check_branch
        %192 = sbr.rel (%p190) target = $region32
      $region31: #{tpu_custom_call.1} parent=5 // pred_region
        // Predicated region
        $region33: #{tpu_custom_call.1} parent=31 // pred_check
          %p193 = pneg %p36
        $region34: #{tpu_custom_call.1} parent=31 // pred_check_branch
          %195 = sbr.rel (%p193) target = $region36
        $region35: #{tpu_custom_call.1} parent=31 // pred_region
          %s196 = sand.u32 %s26, 1
          %s197 = scalar_lea.sflag [#allocation4], %s196
          %s198 = sand.u32 %s26, 1
          %s199 = smul.addr %s198, 8
          %s200 = scalar_lea.vmem [#allocation3], %s199
          %s202 = ssub.s32 128, 128
          %203 = vsyncadd %s197, %s202
          %s204 = smul.addr %s16, 128
          %s205 = scalar_lea.hbm %s0, %s204
          %s207 = sshll.u32 %s200, 4
          %s208 = int_to_ptr.vmem [resolvable:$true] %s207
          %210 = dma.hbm_to_vmem [thread:$0]  %s205, 128, %s208, %s197
        $region36: #{tpu_custom_call.1} parent=31 // pred_fallthru
          _
      $region32: #{tpu_custom_call.1} parent=5 // pred_fallthru
        _
      %p211 = scmp.le.s32.totalorder 1, %s16
      %p212 = scmp.lt.s32.totalorder %s16, 3
      %p213 = pnand %p211, %p212
      %p214 = pneg %p213
      // Predicated region
      $region37: #{tpu_custom_call.1} parent=5 // pred_check
        _
      $region38: #{tpu_custom_call.1} parent=5 // pred_check_branch
        %216 = sbr.rel (%p213) target = $region40
      $region39: #{tpu_custom_call.1} parent=5 // pred_region
        %s217 = ssub.s32 %s16, 1
        %s218 = sand.u32 %s29, 1
        %s219 = scalar_lea.sflag [#allocation4], %s218
        %s220 = sand.u32 %s29, 1
        %s221 = smul.addr %s220, 8
        %s222 = scalar_lea.vmem [#allocation3], %s221
        // Predicated region
        $region41: #{tpu_custom_call.1} parent=39 // pred_check
          %p223 = pneg %p42
        $region42: #{tpu_custom_call.1} parent=39 // pred_check_branch
          %225 = sbr.rel (%p223) target = $region44
        $region43: #{tpu_custom_call.1} parent=39 // pred_region
          %226 = dma.done %s219, 128
        $region44: #{tpu_custom_call.1} parent=39 // pred_fallthru
          _
        // Predicated region
        $region45: #{tpu_custom_call.1} parent=39 // pred_check
          %p227 = pneg %p63
        $region46: #{tpu_custom_call.1} parent=39 // pred_check_branch
          %229 = sbr.rel (%p227) target = $region48
        $region47: #{tpu_custom_call.1} parent=39 // pred_region
          %230 = dma.done [#allocation6], 1024
        $region48: #{tpu_custom_call.1} parent=39 // pred_fallthru
          _
        %s231 = sand.u32 %s29, 1
        %s232 = scalar_lea.sflag [#allocation4], %s231
        %s233 = sand.u32 %s29, 1
        %s234 = smul.addr %s233, 8
        %s235 = scalar_lea.vmem [#allocation3], %s234
        %p236 = pneg %p42
        %p237 = pneg %p39
        %p238 = pneg %p63
        %p239 = pneg %p60
        %p240 = pneg %p84
        %p241 = pneg %p81
        %p242 = pneg %p105
        %p243 = pneg %p102
        %p244 = pneg %p126
        %p245 = pneg %p123
        %p246 = pneg %p152
        %p247 = pneg %p149
        %p248 = scmp.lt.s32.totalorder %s21, 1
        %s249 = scalar_select %p248, %s21, 1
        %s250 = smul.addr %s249, 8
        %s251 = scalar_lea.vmem %s5, %s250
        %p252 = scmp.lt.s32.totalorder %s21, 1
        %s253 = scalar_select %p252, %s21, 1
        %s254 = smul.addr %s253, 8
        %s255 = scalar_lea.vmem %s5, %s254
        %v257 = vld [vmem:[%s222] sm:$0xff]
        %v258 = vpack.c.bf16 %v257, %v257
        %v259 = vld [vmem:[#allocation5] sm:$0xf]
        %v260 = vld [vmem:[#allocation5 + $0x4] sm:$0xf]
        %v261 = vld [vmem:[#allocation5 + $0x8] sm:$0xf]
        %v262 = vld [vmem:[#allocation5 + $0xc] sm:$0xf]
        %v263 = vld [vmem:[#allocation5 + $0x10] sm:$0xf]
        %v264 = vld [vmem:[#allocation5 + $0x14] sm:$0xf]
        %v265 = vld [vmem:[#allocation5 + $0x18] sm:$0xf]
        %v266 = vld [vmem:[#allocation5 + $0x1c] sm:$0xf]
        %v267 = vld [vmem:[#allocation5 + $0x20] sm:$0xf]
        %v268 = vld [vmem:[#allocation5 + $0x24] sm:$0xf]
        %v269 = vld [vmem:[#allocation5 + $0x28] sm:$0xf]
        %v270 = vld [vmem:[#allocation5 + $0x2c] sm:$0xf]
        %v271 = vld [vmem:[#allocation5 + $0x30] sm:$0xf]
        %v272 = vld [vmem:[#allocation5 + $0x34] sm:$0xf]
        %v273 = vld [vmem:[#allocation5 + $0x38] sm:$0xf]
        %v274 = vld [vmem:[#allocation5 + $0x3c] sm:$0xf]
        %v275 = vld [vmem:[%s2] sm:$0x1]
        %v277 = vlaneseq
        %v278 = vshrl.u32 %v277, 7
        %v279 = vsub.s32 0, %v278
        %v280 = vrot.slane %v275, %v279
        %v298 = vunpack.c.l.b16 %v259
        %v299 = vunpack.c.l.b16 %v260
        %v300 = vunpack.c.l.b16 %v261
        %v301 = vunpack.c.l.b16 %v262
        %v302 = vunpack.c.l.b16 %v263
        %v303 = vunpack.c.l.b16 %v264
        %v304 = vunpack.c.l.b16 %v265
        %v305 = vunpack.c.l.b16 %v266
        %v306 = vunpack.c.l.b16 %v267
        %v307 = vunpack.c.l.b16 %v268
        %v308 = vunpack.c.l.b16 %v269
        %v309 = vunpack.c.l.b16 %v270
        %v310 = vunpack.c.l.b16 %v271
        %v311 = vunpack.c.l.b16 %v272
        %v312 = vunpack.c.l.b16 %v273
        %v313 = vunpack.c.l.b16 %v274
        %v314 = vpack.c.b16 %v299, %v298
        %v315 = vpack.c.b16 %v301, %v300
        %v316 = vpack.c.b16 %v303, %v302
        %v317 = vpack.c.b16 %v305, %v304
        %v318 = vpack.c.b16 %v307, %v306
        %v319 = vpack.c.b16 %v309, %v308
        %v320 = vpack.c.b16 %v311, %v310
        %v321 = vpack.c.b16 %v313, %v312
        %330 = vmatprep.subr.bf16.mxu0 0
        %331 = vmatpush1.bf16.msra.mxu0 %v321
        %332 = vmatprep.subr.bf16.mxu0 0
        %333 = vmatpush1.bf16.msra.mxu0 %v320
        %334 = vmatprep.subr.bf16.mxu0 0
        %335 = vmatpush1.bf16.msra.mxu0 %v319
        %336 = vmatprep.subr.bf16.mxu0 0
        %337 = vmatpush1.bf16.msra.mxu0 %v318
        %338 = vmatprep.subr.bf16.mxu0 0
        %339 = vmatpush1.bf16.msra.mxu0 %v317
        %340 = vmatprep.subr.bf16.mxu0 0
        %341 = vmatpush1.bf16.msra.mxu0 %v316
        %342 = vmatprep.subr.bf16.mxu0 0
        %343 = vmatpush1.bf16.msra.mxu0 %v315
        %344 = vmatprep.subr.bf16.mxu0 0
        %345 = vmatpush1.bf16.msra.mxu0 %v314
        %346 = vmatprep.subr.bf16.mxu0 0
        %347 = vmatpush2.bf16.msra.mxu0 0
        %348 = vmatprep.subr.bf16.mxu0 0
        %349 = vmatpush2.bf16.msra.mxu0 0
        %350 = vmatprep.subr.bf16.mxu0 0
        %351 = vmatpush2.bf16.msra.mxu0 0
        %352 = vmatprep.subr.bf16.mxu0 0
        %353 = vmatpush2.bf16.msra.mxu0 0
        %354 = vmatprep.subr.bf16.mxu0 0
        %355 = vmatpush2.bf16.msra.mxu0 0
        %356 = vmatprep.subr.bf16.mxu0 0
        %357 = vmatpush2.bf16.msra.mxu0 0
        %358 = vmatprep.subr.bf16.mxu0 0
        %359 = vmatpush2.bf16.msra.mxu0 0
        %360 = vmatprep.subr.bf16.mxu0 0
        %361 = vmatpush2.bf16.msra.mxu0 0
        %362 = vmatprep.mubr.bf16.mxu0 0
        %363 = vmatmul.mubr.bf16.gmra.mxu0 %v258
        %v364 = vpop.f32.mrf.mxu0
        %v365 = vadd.f32 %v280, %v364
        %v366 = vpop.f32.mrf.mxu0
        %v367 = vpop.f32.mrf.mxu0
        %v368 = vpop.f32.mrf.mxu0
        %369 = vdwg.mxu0
        %v370 = vmax.f32 %v365, 0.0
        %v371 = vld [vmem:[%s3] sm:$0x1]
        %v373 = vlaneseq
        %v374 = vshrl.u32 %v373, 7
        %v375 = vsub.s32 0, %v374
        %v376 = vrot.slane %v371, %v375
        %v378 = vmul.f32 %v370, %v376
        %379 = vadd.xlane.f32.xlu0 %v378
        %v380 = vpop.xlane.xlu0 %379
        %s381 = sld [smem:[#allocation2]]
        %v382 = vstv %s381
        %v383 = vadd.f32 %v380, %v382
        %v384 = vxor.u32 %v383, 2147483648
        %v385 = vmul.f32 %v384, 1.442695
        %v386 = vpow.pop %v385
        %v387 = vadd.f32 %v386, 1.0
        %v388 = vrcp.pop %v387
        %v389 = vmul.f32 1.0, %v388
        %vm390 = vcmask 7168
        %391 = vst.msk [vmem:[%s255] sm:$0xff] %vm390, %v389
        %p392 = scmp.lt.s32.totalorder %s21, 1
        %s393 = scalar_select %p392, %s21, 1
        %s394 = smul.addr %s393, 8
        %s395 = scalar_lea.vmem %s5, %s394
        // Predicated region
        $region49: #{tpu_custom_call.1} parent=39 // pred_check
          %p396 = pneg %p149
        $region50: #{tpu_custom_call.1} parent=39 // pred_check_branch
          %398 = sbr.rel (%p396) target = $region52
        $region51: #{tpu_custom_call.1} parent=39 // pred_region
          _
        $region52: #{tpu_custom_call.1} parent=39 // pred_fallthru
          _
      $region40: #{tpu_custom_call.1} parent=5 // pred_fallthru
        _
      %p399 = scmp.le.s32.totalorder 2, %s16
      // Predicated region
      $region53: #{tpu_custom_call.1} parent=5 // pred_check
        %p400 = pneg %p399
      $region54: #{tpu_custom_call.1} parent=5 // pred_check_branch
        %402 = sbr.rel (%p400) target = $region56
      $region55: #{tpu_custom_call.1} parent=5 // pred_region
        %s403 = ssub.s32 %s16, 2
        // Predicated region
        $region57: #{tpu_custom_call.1} parent=55 // pred_check
          %p404 = pneg %p155
        $region58: #{tpu_custom_call.1} parent=55 // pred_check_branch
          %406 = sbr.rel (%p404) target = $region60
        $region59: #{tpu_custom_call.1} parent=55 // pred_region
          %p407 = scmp.lt.s32.totalorder %s22, 1
          %s408 = scalar_select %p407, %s22, 1
          %s409 = smul.addr %s408, 8
          %s410 = scalar_lea.vmem %s5, %s409
        $region60: #{tpu_custom_call.1} parent=55 // pred_fallthru
          _
      $region56: #{tpu_custom_call.1} parent=5 // pred_fallthru
        _
    $region6: #{tpu_custom_call.1} parent=1 // loop_footer
      %s20 = sadd.s32 1, %s16
    $region7: #{tpu_custom_call.1} parent=1 // loop_footer_branch
      %15 = sbr.rel target = $region3
    $region8: #{tpu_custom_call.1} parent=1 // loop_exit
      _
    %411 = vsyncpa [#allocation4], 1
    %s412 = scalar_lea.sflag [#allocation4], 1
    %413 = vsyncpa %s412, 1
    %414 = vsyncpa [#allocation6], 1

</llo_original>
